<compile_context>
chip_gen: v5e
topology: v5e:2x2
jax: 0.10.0
libtpu: 0.0.40
codegen_flags: <defaults>
</compile_context>

<pallas_src>
import functools

import jax
import jax.numpy as jnp
from jax import lax
from jax.experimental import pallas as pl
from jax.experimental.pallas import tpu as pltpu


# ---------------------------------------------------------------------------
# helpers
# ---------------------------------------------------------------------------
def _mm_t(a, b):
    """a @ b.T with f32 accumulation (PyTorch conv/linear weight is (out, in))."""
    return lax.dot_general(a, b, (((1,), (1,)), ((), ())),
                           preferred_element_type=jnp.float32)


def _pick_row_tile(n):
    """Largest nice row-tile (multiple of 8) that divides n; fall back to n."""
    for t in (256, 128, 64, 32, 16, 8):
        if n % t == 0:
            return t
    return n


_COMPILER_PARAMS_1D = pltpu.CompilerParams(
    dimension_semantics=("parallel",),
    vmem_limit_bytes=32 * 1024 * 1024,
)


# ---------------------------------------------------------------------------
# Kernel 1: 1x1 Conv (bias folded from BN) + SiLU, row-tiled matmul
#   x: (T, Cin) f32 ; w: (Cout, Cin) bf16 ; shift: (1, Cout) f32
# ---------------------------------------------------------------------------
def pointwise_conv_kernel(x_ref, w_ref, b_ref, o_ref):
    y = _mm_t(x_ref[...].astype(jnp.bfloat16), w_ref[...]) + b_ref[...]
    o_ref[...] = y * jax.nn.sigmoid(y)          # SiLU


def pointwise_conv(x2d, wf, shift):
    n, cin = x2d.shape
    cout = wf.shape[0]
    t = _pick_row_tile(n)
    return pl.pallas_call(
        pointwise_conv_kernel,
        out_shape=jax.ShapeDtypeStruct((n, cout), jnp.float32),
        grid=(n // t,),
        in_specs=[pl.BlockSpec((t, cin), lambda i: (i, 0)),
                  pl.BlockSpec((cout, cin), lambda i: (0, 0)),
                  pl.BlockSpec((1, cout), lambda i: (0, 0))],
        out_specs=pl.BlockSpec((t, cout), lambda i: (i, 0)),
        compiler_params=_COMPILER_PARAMS_1D,
    )(x2d, wf, shift)


# ---------------------------------------------------------------------------
# Kernel 2: the n Dense_Bottleneck layers, grid = (B, n).
# Per layer (with folded BN, e=1.0 so all channel counts == C):
#   x1 = SiLU(x @ W1^T + s1) [+ x]                      (cv1, 1x1)
#   x4 = SiLU(conv3x3(x1; W4) + s4) [+ x1 + x]          (cv4, 3x3, pad=1)
# (Dense_Bottleneck.cv2 / cv3 exist in __init__ but are unused in forward.)
# The running activation lives in a VMEM scratch across the layer axis.
# ---------------------------------------------------------------------------
def dense_bottleneck_kernel(x_ref, w1_ref, b1_ref, w4_ref, b4_ref, o_ref,
                            act_ref, pad_ref, *, add):
    H, W, C = act_ref.shape
    l = pl.program_id(1)

    @pl.when(l == 0)
    def _():
        act_ref[...] = x_ref[0]                          # load input activation

    x = act_ref[...]                                     # (H, W, C) f32
    x2d = x.reshape(H * W, C)

    # cv1: 1x1 conv (+ folded BN) + SiLU (+ residual)
    y1 = _mm_t(x2d.astype(jnp.bfloat16), w1_ref[0]) + b1_ref[0]
    y1 = y1 * jax.nn.sigmoid(y1)
    x1 = (y1 + x2d) if add else y1

    # cv4: 3x3 conv (pad=1) as 9 shifted matmuls on a zero-padded VMEM image
    pad_ref[...] = jnp.zeros(pad_ref.shape, pad_ref.dtype)
    pad_ref[1:H + 1, 1:W + 1, :] = x1.reshape(H, W, C)
    acc = jnp.zeros((H * W, C), jnp.float32)
    for k in range(9):                                   # static unroll over taps
        dh, dw = k // 3, k % 3
        patch = pad_ref[dh:dh + H, dw:dw + W, :]
        patch = patch.reshape(H * W, C).astype(jnp.bfloat16)
        acc = acc + _mm_t(patch, w4_ref[0, k])
    y4 = acc + b4_ref[0]
    y4 = y4 * jax.nn.sigmoid(y4)
    x4 = (y4 + x1 + x2d) if add else y4

    act_ref[...] = x4.reshape(H, W, C)                   # carry to next layer
    o_ref[0] = act_ref[...]                              # resident; flushed per b


def dense_bottlenecks(a, w1s, b1s, w4s, b4s, *, add):
    B, H, W, C = a.shape
    n = w1s.shape[0]
    kernel = functools.partial(dense_bottleneck_kernel, add=add)
    return pl.pallas_call(
        kernel,
        out_shape=jax.ShapeDtypeStruct((B, H, W, C), jnp.float32),
        grid=(B, n),
        in_specs=[
            pl.BlockSpec((1, H, W, C), lambda b, l: (b, 0, 0, 0)),   # activation
            pl.BlockSpec((1, C, C),    lambda b, l: (l, 0, 0)),      # cv1 weight
            pl.BlockSpec((1, 1, C),    lambda b, l: (l, 0, 0)),      # cv1 shift
            pl.BlockSpec((1, 9, C, C), lambda b, l: (l, 0, 0, 0)),   # cv4 weight
            pl.BlockSpec((1, 1, C),    lambda b, l: (l, 0, 0)),      # cv4 shift
        ],
        out_specs=pl.BlockSpec((1, H, W, C), lambda b, l: (b, 0, 0, 0)),
        scratch_shapes=[pltpu.VMEM((H, W, C), jnp.float32),          # activation carry
                        pltpu.VMEM((H + 2, W + 2, C), jnp.float32)], # padded image
        compiler_params=pltpu.CompilerParams(
            dimension_semantics=("parallel", "arbitrary"),
            vmem_limit_bytes=32 * 1024 * 1024),
    )(a, w1s, b1s, w4s, b4s)


# ---------------------------------------------------------------------------
# Kernel 3 ("tail"): fused cv2 + channel-concat + cv3 (all 1x1 Conv+BN+SiLU).
#   out = SiLU( [m_out | SiLU(x @ W2^T + s2)] @ W3^T + s3 )
# The concat is eliminated by splitting W3 along its input channels.
# ---------------------------------------------------------------------------
def tail_kernel(m_ref, x_ref, w2_ref, b2_ref, w3a_ref, w3b_ref, b3_ref, o_ref):
    h2 = _mm_t(x_ref[...].astype(jnp.bfloat16), w2_ref[...]) + b2_ref[...]
    h2 = h2 * jax.nn.sigmoid(h2)                                     # cv2 branch
    y = (_mm_t(m_ref[...].astype(jnp.bfloat16), w3a_ref[...])
         + _mm_t(h2.astype(jnp.bfloat16), w3b_ref[...])
         + b3_ref[...])                                              # cv3 on concat
    o_ref[...] = y * jax.nn.sigmoid(y)


def tail(m2d, x2d, w2f, b2, w3a, w3b, b3):
    n, c1 = x2d.shape
    c_ = m2d.shape[1]
    c2 = w3a.shape[0]
    t = _pick_row_tile(n)
    return pl.pallas_call(
        tail_kernel,
        out_shape=jax.ShapeDtypeStruct((n, c2), jnp.float32),
        grid=(n // t,),
        in_specs=[pl.BlockSpec((t, c_), lambda i: (i, 0)),
                  pl.BlockSpec((t, c1), lambda i: (i, 0)),
                  pl.BlockSpec((c_, c1), lambda i: (0, 0)),
                  pl.BlockSpec((1, c_), lambda i: (0, 0)),
                  pl.BlockSpec((c2, c_), lambda i: (0, 0)),
                  pl.BlockSpec((c2, c_), lambda i: (0, 0)),
                  pl.BlockSpec((1, c2), lambda i: (0, 0))],
        out_specs=pl.BlockSpec((t, c2), lambda i: (i, 0)),
        compiler_params=_COMPILER_PARAMS_1D,
    )(m2d, x2d, w2f, b2, w3a, w3b, b3)


# ---------------------------------------------------------------------------
# Dense_C3 forward (glue in plain JAX, compute in Pallas)
#   out = cv3( cat( m(cv1(x)), cv2(x) ) )
# ---------------------------------------------------------------------------
def dense_c3_forward(x_nchw, params):
    B, C1, H, W = x_nchw.shape
    x2d = jnp.transpose(x_nchw, (0, 2, 3, 1)).reshape(B * H * W, C1)  # NCHW -> (N, c1)

    # cv1 of Dense_C3
    a2d = pointwise_conv(x2d, params["cv1_w"], params["cv1_b"])       # (N, c_)
    c_ = a2d.shape[1]
    a = a2d.reshape(B, H, W, c_)

    # m: n stacked Dense_Bottleneck layers (activation stays in VMEM across layers)
    if params["m_w1"].shape[0] > 0:
        m_out = dense_bottlenecks(a, params["m_w1"], params["m_b1"],
                                  params["m_w4"], params["m_b4"],
                                  add=params["shortcut"])
    else:
        m_out = a
    m2d = m_out.reshape(B * H * W, c_)

    # fused cv2 + concat + cv3
    out2d = tail(m2d, x2d, params["cv2_w"], params["cv2_b"],
                 params["cv3_wa"], params["cv3_wb"], params["cv3_b"])
    c2 = out2d.shape[1]
    return jnp.transpose(out2d.reshape(B, H, W, c2), (0, 3, 1, 2))    # -> NCHW


# ---------------------------------------------------------------------------
# deterministic parameter init + BatchNorm folding (eval-mode running stats)
# ---------------------------------------------------------------------------
def _fold_bn_1x1(w, gamma, beta, mean, var, eps=1e-5):
    scale = gamma / jnp.sqrt(var + eps)
    wf = (w * scale[:, None]).astype(jnp.bfloat16)                    # (Cout, Cin)
    shift = (beta - mean * scale).reshape(1, -1).astype(jnp.float32)
    return wf, shift


def _fold_bn_3x3(w, gamma, beta, mean, var, eps=1e-5):
    # w: (Cout, Cin, 3, 3) -> (9, Cout, Cin), tap k = kh*3 + kw
    scale = gamma / jnp.sqrt(var + eps)
    wf = w * scale[:, None, None, None]
    cout, cin = w.shape[0], w.shape[1]
    wf = jnp.transpose(wf, (2, 3, 0, 1)).reshape(9, cout, cin).astype(jnp.bfloat16)
    shift = (beta - mean * scale).reshape(1, -1).astype(jnp.float32)
    return wf, shift


def init_params(key, c1, c2, n=1, shortcut=True, e=0.5):
    c_ = int(c2 * e)
    keys = iter(jax.random.split(key, 8 + 4 * n))
    s = 0.1

    def conv_w(cout, cin, k=1):
        shape = (cout, cin) if k == 1 else (cout, cin, k, k)
        return jax.random.normal(next(keys), shape, jnp.float32) * s

    def bn(cout):
        # PyTorch BatchNorm2d defaults (eval): gamma=1, beta=0, mean=0, var=1
        return (jnp.ones((cout,), jnp.float32), jnp.zeros((cout,), jnp.float32),
                jnp.zeros((cout,), jnp.float32), jnp.ones((cout,), jnp.float32))

    params = {"shortcut": bool(shortcut)}
    params["cv1_w"], params["cv1_b"] = _fold_bn_1x1(conv_w(c_, c1), *bn(c_))
    params["cv2_w"], params["cv2_b"] = _fold_bn_1x1(conv_w(c_, c1), *bn(c_))
    w3f, b3 = _fold_bn_1x1(conv_w(c2, 2 * c_), *bn(c2))
    params["cv3_wa"], params["cv3_wb"], params["cv3_b"] = w3f[:, :c_], w3f[:, c_:], b3

    m_w1, m_b1, m_w4, m_b4 = [], [], [], []
    for _ in range(n):
        # Dense_Bottleneck(c_, c_, e=1.0): cv1 1x1 (c_->c_), cv4 3x3 (c_->c_).
        # (its cv2 / cv3 are never used in forward, so they are not materialized)
        w1f, s1 = _fold_bn_1x1(conv_w(c_, c_), *bn(c_))
        w4f, s4 = _fold_bn_3x3(conv_w(c_, c_, 3), *bn(c_))
        m_w1.append(w1f); m_b1.append(s1); m_w4.append(w4f); m_b4.append(s4)
    params["m_w1"] = jnp.stack(m_w1) if n else jnp.zeros((0, c_, c_), jnp.bfloat16)
    params["m_b1"] = jnp.stack(m_b1) if n else jnp.zeros((0, 1, c_), jnp.float32)
    params["m_w4"] = jnp.stack(m_w4) if n else jnp.zeros((0, 9, c_, c_), jnp.bfloat16)
    params["m_b4"] = jnp.stack(m_b4) if n else jnp.zeros((0, 1, c_), jnp.float32)
    return params


if __name__ == "__main__":
    B, C1, C2, H, W = 2, 16, 32, 16, 16      # c_ = 16, N = 512 rows
    N_BOTTLENECKS = 2

    key = jax.random.PRNGKey(0)
    pkey, xkey = jax.random.split(key)
    params = init_params(pkey, C1, C2, n=N_BOTTLENECKS, shortcut=True)
    x = jax.random.normal(xkey, (B, C1, H, W), jnp.float32)

    out = dense_c3_forward(x, params)
    out = jax.block_until_ready(out)

    assert out.shape == (B, C2, H, W), out.shape
    assert bool(jnp.all(jnp.isfinite(out)))
    print("KERNEL_OK")
</pallas_src>

<mosaic_0001>
module attributes {stable_mosaic.version = 11 : i64} {
  func.func @pointwise_conv_kernel(%arg0: i32, %arg1: memref<256x16xf32, #tpu.memory_space<vmem>>, %arg2: memref<16x16xbf16, #tpu.memory_space<vmem>>, %arg3: memref<1x16xf32, #tpu.memory_space<vmem>>, %arg4: memref<256x16xf32, #tpu.memory_space<vmem>>) attributes {dimension_semantics = [#tpu.dimension_semantics<parallel>], iteration_bounds = array<i64: 2>, scalar_prefetch = 0 : i64, scratch_operands = 0 : i64, tpu.core_type = #tpu.core_type<tc>, window_params = [{transform_indices = @transform_0, window_bounds = array<i64: 256, 16>}, {pipeline_mode = #tpu.pipeline_mode<synchronous>, transform_indices = @transform_1, window_bounds = array<i64: 16, 16>}, {pipeline_mode = #tpu.pipeline_mode<synchronous>, transform_indices = @transform_2, window_bounds = array<i64: 1, 16>}, {transform_indices = @transform_3, window_bounds = array<i64: 256, 16>}]} {
    %c0 = arith.constant 0 : index
    %c0_0 = arith.constant 0 : index
    %0 = vector.load %arg1[%c0, %c0_0] : memref<256x16xf32, #tpu.memory_space<vmem>>, vector<256x16xf32>
    %1 = arith.truncf %0 : vector<256x16xf32> to vector<256x16xbf16>
    %c0_1 = arith.constant 0 : index
    %c0_2 = arith.constant 0 : index
    %2 = vector.load %arg2[%c0_1, %c0_2] : memref<16x16xbf16, #tpu.memory_space<vmem>>, vector<16x16xbf16>
    %cst = arith.constant dense<0.000000e+00> : vector<256x16xf32>
    %3 = tpu.matmul %1, %2, %cst {dimension_numbers = #tpu.dot_dimension_numbers<[1], [1], [0], [0], [0, 0, 1, 0], [], []>} : vector<256x16xbf16>, vector<16x16xbf16>, vector<256x16xf32> -> vector<256x16xf32>
    %c0_3 = arith.constant 0 : index
    %c0_4 = arith.constant 0 : index
    %4 = vector.load %arg3[%c0_3, %c0_4] : memref<1x16xf32, #tpu.memory_space<vmem>>, vector<1x16xf32>
    %5 = vector.broadcast %4 : vector<1x16xf32> to vector<256x16xf32>
    %6 = arith.addf %3, %5 : vector<256x16xf32>
    %7 = arith.negf %6 : vector<256x16xf32>
    %8 = math.exp %7 : vector<256x16xf32>
    %cst_5 = arith.constant 1.000000e+00 : f32
    %9 = vector.broadcast %cst_5 : f32 to vector<256x16xf32>
    %10 = arith.addf %9, %8 : vector<256x16xf32>
    %11 = arith.divf %9, %10 : vector<256x16xf32>
    %12 = arith.mulf %6, %11 : vector<256x16xf32>
    %c0_6 = arith.constant 0 : index
    %c0_7 = arith.constant 0 : index
    %13 = vector.load %arg4[%c0_6, %c0_7] : memref<256x16xf32, #tpu.memory_space<vmem>>, vector<256x16xf32>
    tpu.vector_store %arg4[%c0_6, %c0_7], %12 {strides = array<i32>} : memref<256x16xf32, #tpu.memory_space<vmem>>, vector<256x16xf32>,
    return
  }
  func.func @transform_0(%arg0: i32) -> (i32, i32) {
    %c0_i32 = arith.constant 0 : i32
    %c0_i32_0 = arith.constant 0 : i32
    return %arg0, %c0_i32 : i32, i32
  }
  func.func @transform_1(%arg0: i32) -> (i32, i32) {
    %c0_i32 = arith.constant 0 : i32
    %c0_i32_0 = arith.constant 0 : i32
    %c0_i32_1 = arith.constant 0 : i32
    return %c0_i32, %c0_i32_0 : i32, i32
  }
  func.func @transform_2(%arg0: i32) -> (i32, i32) {
    %c0_i32 = arith.constant 0 : i32
    %c0_i32_0 = arith.constant 0 : i32
    %c0_i32_1 = arith.constant 0 : i32
    return %c0_i32, %c0_i32_0 : i32, i32
  }
  func.func @transform_3(%arg0: i32) -> (i32, i32) {
    %c0_i32 = arith.constant 0 : i32
    %c0_i32_0 = arith.constant 0 : i32
    return %arg0, %c0_i32 : i32, i32
  }
}

</mosaic_0001>

<llo_original>
// kernel: tpu_custom_call.1
$region0: #{tpu_custom_call.1}
  #allocation0 [shape = 'u32[]', space=smem, size = 0x4, offset = 0x4, fixed_abs, tag = 'smem constant byte address 0x4 - core index']
  #allocation1 [shape = 'u32[72,128]{1,0:T(1,128)}', space=vmem, size = 0x9000, scoped, tag = 'internal scratch']
  %s0 = inlined_call_operand.vmem [shape: f32[512,16], index: 0, kind: input, shape index: {}]
  %s1 = inlined_call_operand.vmem [shape: bf16[16,16], index: 1, kind: input, shape index: {}]
  %s2 = inlined_call_operand.vmem [shape: f32[1,16], index: 2, kind: input, shape index: {}]
  %s3 = inlined_call_operand.vmem [shape: f32[512,16], index: 3, kind: output, shape index: {}]
  %s4 = sld [smem:[#allocation0]]
  $region45: #{tpu_custom_call.1} parent=0
    _
  %s6 = ssub.s32 1, %s4
  %s7 = scalar_select 0, %s6, %s4
  loop: start=0, step=1, limit=4
  $region2: #{tpu_custom_call.1} parent=0 // loop_pre_header
    _
  $region3: #{tpu_custom_call.1} parent=0 // loop_header
    %s9 = sphi 0, %s13
    %p10 = scmp.ge.s32.totalorder %s9, 4
    %s19 = sphi 0, %s21
    %s22 = sphi 0, %s19
    %s23 = sphi 0, %s22
    %s39 = sphi 0, %s23
    %s43 = sphi 0, %s43
    %s45 = sphi 0, %s43
    %s46 = sphi 0, %s45
    %s60 = sphi 0, %s46
    %s64 = sphi 0, %s64
    %s66 = sphi 0, %s64
    %s67 = sphi 0, %s66
    %s81 = sphi 0, %s67
    %s87 = sphi 0, %s89
    %s90 = sphi 0, %s87
    %s91 = sphi 0, %s90
    %s107 = sphi 0, %s91
  $region4: #{tpu_custom_call.1} parent=0 // loop_header_branch
    %12 = sbr.rel (%p10) target = $region8
  $region5: #{tpu_custom_call.1} parent=0 // loop_body
    %s14 = ssub.s32 %s9, 1
    %s15 = ssub.s32 %s9, 2
    %s16 = sadd.s32 %s9, 1
    %s17 = ssub.s32 %s9, %s16
    %p18 = scmp.eq.s32.totalorder %s17, 0
    %s20 = sadd.s32 %s19, 1
    %s21 = scalar_select %p18, %s19, %s20
    %p24 = pneg %p18
    %p25 = scmp.eq.s32.totalorder %s9, 1
    %p26 = por %p24, %p25
    %p27 = scmp.ne.s32.totalorder %s19, %s22
    %p28 = scmp.eq.s32.totalorder %s9, 0
    %p29 = por %p27, %p28
    %p30 = scmp.ne.s32.totalorder %s19, %s22
    %p31 = scmp.eq.s32.totalorder %s14, 1
    %p32 = por %p30, %p31
    %p33 = scmp.ne.s32.totalorder %s22, %s23
    %p34 = scmp.eq.s32.totalorder %s14, 0
    %p35 = por %p33, %p34
    %p36 = scmp.ne.s32.totalorder %s22, %s23
    %p37 = scmp.eq.s32.totalorder %s15, 1
    %p38 = por %p36, %p37
    %p40 = scmp.ne.s32.totalorder %s23, %s39
    %p41 = scmp.eq.s32.totalorder %s15, 0
    %p42 = por %p40, %p41
    %s44 = sadd.s32 %s43, 1
    %p47 = scmp.eq.s32.totalorder %s9, 1
    %p48 = scmp.ne.s32.totalorder %s43, %s45
    %p49 = scmp.eq.s32.totalorder %s9, 0
    %p50 = por %p48, %p49
    %p51 = scmp.ne.s32.totalorder %s43, %s45
    %p52 = scmp.eq.s32.totalorder %s14, 1
    %p53 = por %p51, %p52
    %p54 = scmp.ne.s32.totalorder %s45, %s46
    %p55 = scmp.eq.s32.totalorder %s14, 0
    %p56 = por %p54, %p55
    %p57 = scmp.ne.s32.totalorder %s45, %s46
    %p58 = scmp.eq.s32.totalorder %s15, 1
    %p59 = por %p57, %p58
    %p61 = scmp.ne.s32.totalorder %s46, %s60
    %p62 = scmp.eq.s32.totalorder %s15, 0
    %p63 = por %p61, %p62
    %s65 = sadd.s32 %s64, 1
    %p68 = scmp.eq.s32.totalorder %s9, 1
    %p69 = scmp.ne.s32.totalorder %s64, %s66
    %p70 = scmp.eq.s32.totalorder %s9, 0
    %p71 = por %p69, %p70
    %p72 = scmp.ne.s32.totalorder %s64, %s66
    %p73 = scmp.eq.s32.totalorder %s14, 1
    %p74 = por %p72, %p73
    %p75 = scmp.ne.s32.totalorder %s66, %s67
    %p76 = scmp.eq.s32.totalorder %s14, 0
    %p77 = por %p75, %p76
    %p78 = scmp.ne.s32.totalorder %s66, %s67
    %p79 = scmp.eq.s32.totalorder %s15, 1
    %p80 = por %p78, %p79
    %p82 = scmp.ne.s32.totalorder %s67, %s81
    %p83 = scmp.eq.s32.totalorder %s15, 0
    %p84 = por %p82, %p83
    %s85 = ssub.s32 %s9, %s16
    %p86 = scmp.eq.s32.totalorder %s85, 0
    %s88 = sadd.s32 %s87, 1
    %s89 = scalar_select %p86, %s87, %s88
    %p92 = pneg %p86
    %p93 = scmp.eq.s32.totalorder %s9, 1
    %p94 = por %p92, %p93
    %p95 = scmp.ne.s32.totalorder %s87, %s90
    %p96 = scmp.eq.s32.totalorder %s9, 0
    %p97 = por %p95, %p96
    %p98 = scmp.ne.s32.totalorder %s87, %s90
    %p99 = scmp.eq.s32.totalorder %s14, 1
    %p100 = por %p98, %p99
    %p101 = scmp.ne.s32.totalorder %s90, %s91
    %p102 = scmp.eq.s32.totalorder %s14, 0
    %p103 = por %p101, %p102
    %p104 = scmp.ne.s32.totalorder %s90, %s91
    %p105 = scmp.eq.s32.totalorder %s15, 1
    %p106 = por %p104, %p105
    %p108 = scmp.ne.s32.totalorder %s91, %s107
    %p109 = scmp.eq.s32.totalorder %s15, 0
    %p110 = por %p108, %p109
    %p111 = scmp.le.s32.totalorder 1, %s9
    %p112 = scmp.lt.s32.totalorder %s9, 3
    %p113 = pnand %p111, %p112
    %p114 = pneg %p113
    // Predicated region
    $region9: #{tpu_custom_call.1} parent=5 // pred_check
      _
    $region10: #{tpu_custom_call.1} parent=5 // pred_check_branch
      %116 = sbr.rel (%p113) target = $region12
    $region11: #{tpu_custom_call.1} parent=5 // pred_region
      %s117 = ssub.s32 %s9, 1
      // Predicated region
      $region13: #{tpu_custom_call.1} parent=11 // pred_check
        %p118 = pneg %p56
      $region14: #{tpu_custom_call.1} parent=11 // pred_check_branch
        %120 = sbr.rel (%p118) target = $region16
      $region15: #{tpu_custom_call.1} parent=11 // pred_region
        _
      $region16: #{tpu_custom_call.1} parent=11 // pred_fallthru
        _
      // Predicated region
      $region17: #{tpu_custom_call.1} parent=11 // pred_check
        %p121 = pneg %p77
      $region18: #{tpu_custom_call.1} parent=11 // pred_check_branch
        %123 = sbr.rel (%p121) target = $region20
      $region19: #{tpu_custom_call.1} parent=11 // pred_region
        _
      $region20: #{tpu_custom_call.1} parent=11 // pred_fallthru
        _
    $region12: #{tpu_custom_call.1} parent=5 // pred_fallthru
      _
    %p124 = scmp.lt.s32.totalorder %s9, 2
    // Predicated region
    $region21: #{tpu_custom_call.1} parent=5 // pred_check
      %p125 = pneg %p124
    $region22: #{tpu_custom_call.1} parent=5 // pred_check_branch
      %127 = sbr.rel (%p125) target = $region24
    $region23: #{tpu_custom_call.1} parent=5 // pred_region
      // Predicated region
      $region25: #{tpu_custom_call.1} parent=23 // pred_check
        %p128 = pneg %p29
      $region26: #{tpu_custom_call.1} parent=23 // pred_check_branch
        %130 = sbr.rel (%p128) target = $region28
      $region27: #{tpu_custom_call.1} parent=23 // pred_region
        %s131 = smul.u32 32, %s9
        %p132 = scmp.lt.s32.totalorder %s131, 63
        %s133 = scalar_select %p132, %s131, 63
        %s134 = smul.addr %s133, 8
        %s135 = scalar_lea.vmem %s0, %s134
        %s136 = smul.u32 32, %s9
      $region28: #{tpu_custom_call.1} parent=23 // pred_fallthru
        _
    $region24: #{tpu_custom_call.1} parent=5 // pred_fallthru
      _
    %p137 = scmp.le.s32.totalorder 1, %s9
    %p138 = scmp.lt.s32.totalorder %s9, 3
    %p139 = pnand %p137, %p138
    %p140 = pneg %p139
    // Predicated region
    $region29: #{tpu_custom_call.1} parent=5 // pred_check
      _
    $region30: #{tpu_custom_call.1} parent=5 // pred_check_branch
      %142 = sbr.rel (%p139) target = $region32
    $region31: #{tpu_custom_call.1} parent=5 // pred_region
      %s143 = ssub.s32 %s9, 1
      %s144 = smul.u32 32, %s14
      %p145 = scmp.lt.s32.totalorder %s144, 63
      %s146 = scalar_select %p145, %s144, 63
      %s147 = smul.addr %s146, 8
      %s148 = scalar_lea.vmem %s0, %s147
      %p149 = pneg %p35
      %p150 = pneg %p32
      %p151 = pneg %p56
      %p152 = pneg %p53
      %p153 = pneg %p77
      %p154 = pneg %p74
      %p155 = pneg %p103
      %p156 = pneg %p100
      %s157 = smul.u32 32, %s14
      %p158 = scmp.lt.s32.totalorder %s157, 63
      %s159 = scalar_select %p158, %s157, 63
      %s160 = smul.addr %s159, 8
      %s161 = scalar_lea.vmem %s3, %s160
      %s162 = smul.u32 32, %s14
      %p163 = scmp.lt.s32.totalorder %s162, 63
      %s164 = scalar_select %p163, %s162, 63
      %s165 = smul.addr %s164, 8
      %s166 = scalar_lea.vmem %s0, %s165
      %s167 = smul.u32 32, %s14
      %s168 = smul.u32 32, %s14
      %p169 = scmp.lt.s32.totalorder %s168, 63
      %s170 = scalar_select %p169, %s168, 63
      %s171 = smul.addr %s170, 8
      %s172 = scalar_lea.vmem %s3, %s171
      %s173 = smul.u32 32, %s14
      %v175 = vld [vmem:[%s166] sm:$0xff]
      %v176 = vld [vmem:[%s166 + $0x8] sm:$0xff]
      %v177 = vld [vmem:[%s166 + $0x10] sm:$0xff]
      %v178 = vld [vmem:[%s166 + $0x18] sm:$0xff]
      %v179 = vld [vmem:[%s166 + $0x20] sm:$0xff]
      %v180 = vld [vmem:[%s166 + $0x28] sm:$0xff]
      %v181 = vld [vmem:[%s166 + $0x30] sm:$0xff]
      %v182 = vld [vmem:[%s166 + $0x38] sm:$0xff]
      %v183 = vld [vmem:[%s166 + $0x40] sm:$0xff]
      %v184 = vld [vmem:[%s166 + $0x48] sm:$0xff]
      %v185 = vld [vmem:[%s166 + $0x50] sm:$0xff]
      %v186 = vld [vmem:[%s166 + $0x58] sm:$0xff]
      %v187 = vld [vmem:[%s166 + $0x60] sm:$0xff]
      %v188 = vld [vmem:[%s166 + $0x68] sm:$0xff]
      %v189 = vld [vmem:[%s166 + $0x70] sm:$0xff]
      %v190 = vld [vmem:[%s166 + $0x78] sm:$0xff]
      %v191 = vld [vmem:[%s166 + $0x80] sm:$0xff]
      %v192 = vld [vmem:[%s166 + $0x88] sm:$0xff]
      %v193 = vld [vmem:[%s166 + $0x90] sm:$0xff]
      %v194 = vld [vmem:[%s166 + $0x98] sm:$0xff]
      %v195 = vld [vmem:[%s166 + $0xa0] sm:$0xff]
      %v196 = vld [vmem:[%s166 + $0xa8] sm:$0xff]
      %v197 = vld [vmem:[%s166 + $0xb0] sm:$0xff]
      %v198 = vld [vmem:[%s166 + $0xb8] sm:$0xff]
      %v199 = vld [vmem:[%s166 + $0xc0] sm:$0xff]
      %v200 = vld [vmem:[%s166 + $0xc8] sm:$0xff]
      %v201 = vld [vmem:[%s166 + $0xd0] sm:$0xff]
      %v202 = vld [vmem:[%s166 + $0xd8] sm:$0xff]
      %v203 = vld [vmem:[%s166 + $0xe0] sm:$0xff]
      %v204 = vld [vmem:[%s166 + $0xe8] sm:$0xff]
      %v205 = vld [vmem:[%s166 + $0xf0] sm:$0xff]
      %v206 = vld [vmem:[%s166 + $0xf8] sm:$0xff]
      %v207 = vpack.c.bf16 %v176, %v175
      %v208 = vpack.c.bf16 %v178, %v177
      %v209 = vpack.c.bf16 %v180, %v179
      %v210 = vpack.c.bf16 %v182, %v181
      %v211 = vpack.c.bf16 %v184, %v183
      %v212 = vpack.c.bf16 %v186, %v185
      %v213 = vpack.c.bf16 %v188, %v187
      %v214 = vpack.c.bf16 %v190, %v189
      %v215 = vpack.c.bf16 %v192, %v191
      %v216 = vpack.c.bf16 %v194, %v193
      %v217 = vpack.c.bf16 %v196, %v195
      %v218 = vpack.c.bf16 %v198, %v197
      %v219 = vpack.c.bf16 %v200, %v199
      %v220 = vpack.c.bf16 %v202, %v201
      %v221 = vpack.c.bf16 %v204, %v203
      %v222 = vpack.c.bf16 %v206, %v205
      %v223 = vld [vmem:[%s1] sm:$0xf]
      %v224 = vld [vmem:[%s1 + $0x4] sm:$0xf]
      %v225 = vld [vmem:[%s2] sm:$0x1]
      %v227 = vperm.slane %v225, 0
      %v231 = vunpack.c.l.b16 %v223
      %v232 = vunpack.c.l.b16 %v224
      %v233 = vpack.c.b16 %v232, %v231
      %vm234 = vcmask 130048
      %v236 = vsel %vm234, %v207, 0
      %v239 = vsel %vm234, %v208, 0
      %v242 = vsel %vm234, %v209, 0
      %v245 = vsel %vm234, %v210, 0
      %v248 = vsel %vm234, %v211, 0
      %v251 = vsel %vm234, %v212, 0
      %v254 = vsel %vm234, %v213, 0
      %v257 = vsel %vm234, %v214, 0
      %v260 = vsel %vm234, %v215, 0
      %v263 = vsel %vm234, %v216, 0
      %v266 = vsel %vm234, %v217, 0
      %v269 = vsel %vm234, %v218, 0
      %v272 = vsel %vm234, %v219, 0
      %v275 = vsel %vm234, %v220, 0
      %v278 = vsel %vm234, %v221, 0
      %v281 = vsel %vm234, %v222, 0
      %v284 = vsel %vm234, %v233, 0
      %286 = vmatpush.bf16.xpose.msra.mxu0 0
      %287 = vmatpush.bf16.xpose.msra.mxu0 0
      %288 = vmatpush.bf16.xpose.msra.mxu0 0
      %289 = vmatpush.bf16.xpose.msra.mxu0 0
      %290 = vmatpush.bf16.xpose.msra.mxu0 0
      %291 = vmatpush.bf16.xpose.msra.mxu0 0
      %292 = vmatpush.bf16.xpose.msra.mxu0 0
      %293 = vmatpush.bf16.xpose.msra.mxu0 %v284
      %294 = vmatmul.bf16.gmra.mxu0 %v236
      %v295 = vpop.f32.mrf.mxu0
      %v296 = vadd.f32 %v227, %v295
      %v297 = vpop.f32.mrf.mxu0
      %v298 = vadd.f32 %v227, %v297
      %299 = vmatmul.bf16.gmra.mxu0 %v239
      %v300 = vpop.f32.mrf.mxu0
      %v301 = vadd.f32 %v227, %v300
      %v302 = vpop.f32.mrf.mxu0
      %v303 = vadd.f32 %v227, %v302
      %304 = vmatmul.bf16.gmra.mxu0 %v242
      %v305 = vpop.f32.mrf.mxu0
      %v306 = vadd.f32 %v227, %v305
      %v307 = vpop.f32.mrf.mxu0
      %v308 = vadd.f32 %v227, %v307
      %309 = vmatmul.bf16.gmra.mxu0 %v245
      %v310 = vpop.f32.mrf.mxu0
      %v311 = vadd.f32 %v227, %v310
      %v312 = vpop.f32.mrf.mxu0
      %v313 = vadd.f32 %v227, %v312
      %314 = vmatmul.bf16.gmra.mxu0 %v248
      %v315 = vpop.f32.mrf.mxu0
      %v316 = vadd.f32 %v227, %v315
      %v317 = vpop.f32.mrf.mxu0
      %v318 = vadd.f32 %v227, %v317
      %319 = vmatmul.bf16.gmra.mxu0 %v251
      %v320 = vpop.f32.mrf.mxu0
      %v321 = vadd.f32 %v227, %v320
      %v322 = vpop.f32.mrf.mxu0
      %v323 = vadd.f32 %v227, %v322
      %324 = vmatmul.bf16.gmra.mxu0 %v254
      %v325 = vpop.f32.mrf.mxu0
      %v326 = vadd.f32 %v227, %v325
      %v327 = vpop.f32.mrf.mxu0
      %v328 = vadd.f32 %v227, %v327
      %329 = vmatmul.bf16.gmra.mxu0 %v257
      %v330 = vpop.f32.mrf.mxu0
      %v331 = vadd.f32 %v227, %v330
      %v332 = vpop.f32.mrf.mxu0
      %v333 = vadd.f32 %v227, %v332
      %334 = vmatmul.bf16.gmra.mxu0 %v260
      %v335 = vpop.f32.mrf.mxu0
      %v336 = vadd.f32 %v227, %v335
      %v337 = vpop.f32.mrf.mxu0
      %v338 = vadd.f32 %v227, %v337
      %339 = vmatmul.bf16.gmra.mxu0 %v263
      %v340 = vpop.f32.mrf.mxu0
      %v341 = vadd.f32 %v227, %v340
      %v342 = vpop.f32.mrf.mxu0
      %v343 = vadd.f32 %v227, %v342
      %344 = vmatmul.bf16.gmra.mxu0 %v266
      %v345 = vpop.f32.mrf.mxu0
      %v346 = vadd.f32 %v227, %v345
      %v347 = vpop.f32.mrf.mxu0
      %v348 = vadd.f32 %v227, %v347
      %349 = vmatmul.bf16.gmra.mxu0 %v269
      %v350 = vpop.f32.mrf.mxu0
      %v351 = vadd.f32 %v227, %v350
      %v352 = vpop.f32.mrf.mxu0
      %v353 = vadd.f32 %v227, %v352
      %354 = vmatmul.bf16.gmra.mxu0 %v272
      %v355 = vpop.f32.mrf.mxu0
      %v356 = vadd.f32 %v227, %v355
      %v357 = vpop.f32.mrf.mxu0
      %v358 = vadd.f32 %v227, %v357
      %359 = vmatmul.bf16.gmra.mxu0 %v275
      %v360 = vpop.f32.mrf.mxu0
      %v361 = vadd.f32 %v227, %v360
      %v362 = vpop.f32.mrf.mxu0
      %v363 = vadd.f32 %v227, %v362
      %364 = vmatmul.bf16.gmra.mxu0 %v278
      %v365 = vpop.f32.mrf.mxu0
      %v366 = vadd.f32 %v227, %v365
      %v367 = vpop.f32.mrf.mxu0
      %v368 = vadd.f32 %v227, %v367
      %369 = vmatmul.bf16.gmra.mxu0 %v281
      %v370 = vpop.f32.mrf.mxu0
      %v371 = vadd.f32 %v227, %v370
      %v372 = vpop.f32.mrf.mxu0
      %v373 = vadd.f32 %v227, %v372
      %374 = vdwg.mxu0
      %v375 = vxor.u32 %v296, 2147483648
      %v376 = vxor.u32 %v298, 2147483648
      %v377 = vxor.u32 %v301, 2147483648
      %v378 = vxor.u32 %v303, 2147483648
      %v379 = vxor.u32 %v306, 2147483648
      %v380 = vxor.u32 %v308, 2147483648
      %v381 = vxor.u32 %v311, 2147483648
      %v382 = vxor.u32 %v313, 2147483648
      %v383 = vxor.u32 %v316, 2147483648
      %v384 = vxor.u32 %v318, 2147483648
      %v385 = vxor.u32 %v321, 2147483648
      %v386 = vxor.u32 %v323, 2147483648
      %v387 = vxor.u32 %v326, 2147483648
      %v388 = vxor.u32 %v328, 2147483648
      %v389 = vxor.u32 %v331, 2147483648
      %v390 = vxor.u32 %v333, 2147483648
      %v391 = vxor.u32 %v336, 2147483648
      %v392 = vxor.u32 %v338, 2147483648
      %v393 = vxor.u32 %v341, 2147483648
      %v394 = vxor.u32 %v343, 2147483648
      %v395 = vxor.u32 %v346, 2147483648
      %v396 = vxor.u32 %v348, 2147483648
      %v397 = vxor.u32 %v351, 2147483648
      %v398 = vxor.u32 %v353, 2147483648
      %v399 = vxor.u32 %v356, 2147483648
      %v400 = vxor.u32 %v358, 2147483648
      %v401 = vxor.u32 %v361, 2147483648
      %v402 = vxor.u32 %v363, 2147483648
      %v403 = vxor.u32 %v366, 2147483648
      %v404 = vxor.u32 %v368, 2147483648
      %v405 = vxor.u32 %v371, 2147483648
      %v406 = vxor.u32 %v373, 2147483648
      %v407 = vmul.f32 %v375, 1.442695
      %v408 = vpow.pop %v407
      %v409 = vmul.f32 %v376, 1.442695
      %v410 = vpow.pop %v409
      %v411 = vmul.f32 %v377, 1.442695
      %v412 = vpow.pop %v411
      %v413 = vmul.f32 %v378, 1.442695
      %v414 = vpow.pop %v413
      %v415 = vmul.f32 %v379, 1.442695
      %v416 = vpow.pop %v415
      %v417 = vmul.f32 %v380, 1.442695
      %v418 = vpow.pop %v417
      %v419 = vmul.f32 %v381, 1.442695
      %v420 = vpow.pop %v419
      %v421 = vmul.f32 %v382, 1.442695
      %v422 = vpow.pop %v421
      %v423 = vmul.f32 %v383, 1.442695
      %v424 = vpow.pop %v423
      %v425 = vmul.f32 %v384, 1.442695
      %v426 = vpow.pop %v425
      %v427 = vmul.f32 %v385, 1.442695
      %v428 = vpow.pop %v427
      %v429 = vmul.f32 %v386, 1.442695
      %v430 = vpow.pop %v429
      %v431 = vmul.f32 %v387, 1.442695
      %v432 = vpow.pop %v431
      %v433 = vmul.f32 %v388, 1.442695
      %v434 = vpow.pop %v433
      %v435 = vmul.f32 %v389, 1.442695
      %v436 = vpow.pop %v435
      %v437 = vmul.f32 %v390, 1.442695
      %v438 = vpow.pop %v437
      %v439 = vmul.f32 %v391, 1.442695
      %v440 = vpow.pop %v439
      %v441 = vmul.f32 %v392, 1.442695
      %v442 = vpow.pop %v441
      %v443 = vmul.f32 %v393, 1.442695
      %v444 = vpow.pop %v443
      %v445 = vmul.f32 %v394, 1.442695
      %v446 = vpow.pop %v445
      %v447 = vmul.f32 %v395, 1.442695
      %v448 = vpow.pop %v447
      %v449 = vmul.f32 %v396, 1.442695
      %v450 = vpow.pop %v449
      %v451 = vmul.f32 %v397, 1.442695
      %v452 = vpow.pop %v451
      %v453 = vmul.f32 %v398, 1.442695
      %v454 = vpow.pop %v453
      %v455 = vmul.f32 %v399, 1.442695
      %v456 = vpow.pop %v455
      %v457 = vmul.f32 %v400, 1.442695
      %v458 = vpow.pop %v457
      %v459 = vmul.f32 %v401, 1.442695
      %v460 = vpow.pop %v459
      %v461 = vmul.f32 %v402, 1.442695
      %v462 = vpow.pop %v461
      %v463 = vmul.f32 %v403, 1.442695
      %v464 = vpow.pop %v463
      %v465 = vmul.f32 %v404, 1.442695
      %v466 = vpow.pop %v465
      %v467 = vmul.f32 %v405, 1.442695
      %v468 = vpow.pop %v467
      %v469 = vmul.f32 %v406, 1.442695
      %v470 = vpow.pop %v469
      %v471 = vadd.f32 %v408, 1.0
      %v472 = vadd.f32 %v410, 1.0
      %v473 = vadd.f32 %v412, 1.0
      %v474 = vadd.f32 %v414, 1.0
      %v475 = vadd.f32 %v416, 1.0
      %v476 = vadd.f32 %v418, 1.0
      %v477 = vadd.f32 %v420, 1.0
      %v478 = vadd.f32 %v422, 1.0
      %v479 = vadd.f32 %v424, 1.0
      %v480 = vadd.f32 %v426, 1.0
      %v481 = vadd.f32 %v428, 1.0
      %v482 = vadd.f32 %v430, 1.0
      %v483 = vadd.f32 %v432, 1.0
      %v484 = vadd.f32 %v434, 1.0
      %v485 = vadd.f32 %v436, 1.0
      %v486 = vadd.f32 %v438, 1.0
      %v487 = vadd.f32 %v440, 1.0
      %v488 = vadd.f32 %v442, 1.0
      %v489 = vadd.f32 %v444, 1.0
      %v490 = vadd.f32 %v446, 1.0
      %v491 = vadd.f32 %v448, 1.0
      %v492 = vadd.f32 %v450, 1.0
      %v493 = vadd.f32 %v452, 1.0
      %v494 = vadd.f32 %v454, 1.0
      %v495 = vadd.f32 %v456, 1.0
      %v496 = vadd.f32 %v458, 1.0
      %v497 = vadd.f32 %v460, 1.0
      %v498 = vadd.f32 %v462, 1.0
      %v499 = vadd.f32 %v464, 1.0
      %v500 = vadd.f32 %v466, 1.0
      %v501 = vadd.f32 %v468, 1.0
      %v502 = vadd.f32 %v470, 1.0
      %v503 = vrcp.pop %v471
      %v504 = vmul.f32 %v471, %v503
      %v505 = vsub.f32 1.0, %v504
      %v506 = vmul.f32 %v503, %v505
      %v507 = vadd.f32 %v503, %v506
      %vm508 = vweird.f32 %v471
      %vm509 = vweird.f32 %v503
      %vm510 = vmor %vm508, %vm509
      %v511 = vsel %vm510, %v503, %v507
      %v512 = vand.u32 2147483647, %v471
      %vm513 = vcmp.eq.f32.partialorder %v512, 8.507059e+37
      %v514 = vand.u32 %v471, 2147483648
      %v515 = vor.u32 1.1754944e-38, %v514
      %v516 = vsel %vm513, %v515, %v511
      %v517 = vmul.f32 1.0, %v516
      %v518 = vrcp.pop %v472
      %v519 = vmul.f32 %v472, %v518
      %v520 = vsub.f32 1.0, %v519
      %v521 = vmul.f32 %v518, %v520
      %v522 = vadd.f32 %v518, %v521
      %vm523 = vweird.f32 %v472
      %vm524 = vweird.f32 %v518
      %vm525 = vmor %vm523, %vm524
      %v526 = vsel %vm525, %v518, %v522
      %v527 = vand.u32 2147483647, %v472
      %vm528 = vcmp.eq.f32.partialorder %v527, 8.507059e+37
      %v529 = vand.u32 %v472, 2147483648
      %v530 = vor.u32 1.1754944e-38, %v529
      %v531 = vsel %vm528, %v530, %v526
      %v532 = vmul.f32 1.0, %v531
      %v533 = vrcp.pop %v473
      %v534 = vmul.f32 %v473, %v533
      %v535 = vsub.f32 1.0, %v534
      %v536 = vmul.f32 %v533, %v535
      %v537 = vadd.f32 %v533, %v536
      %vm538 = vweird.f32 %v473
      %vm539 = vweird.f32 %v533
      %vm540 = vmor %vm538, %vm539
      %v541 = vsel %vm540, %v533, %v537
      %v542 = vand.u32 2147483647, %v473
      %vm543 = vcmp.eq.f32.partialorder %v542, 8.507059e+37
      %v544 = vand.u32 %v473, 2147483648
      %v545 = vor.u32 1.1754944e-38, %v544
      %v546 = vsel %vm543, %v545, %v541
      %v547 = vmul.f32 1.0, %v546
      %v548 = vrcp.pop %v474
      %v549 = vmul.f32 %v474, %v548
      %v550 = vsub.f32 1.0, %v549
      %v551 = vmul.f32 %v548, %v550
      %v552 = vadd.f32 %v548, %v551
      %vm553 = vweird.f32 %v474
      %vm554 = vweird.f32 %v548
      %vm555 = vmor %vm553, %vm554
      %v556 = vsel %vm555, %v548, %v552
      %v557 = vand.u32 2147483647, %v474
      %vm558 = vcmp.eq.f32.partialorder %v557, 8.507059e+37
      %v559 = vand.u32 %v474, 2147483648
      %v560 = vor.u32 1.1754944e-38, %v559
      %v561 = vsel %vm558, %v560, %v556
      %v562 = vmul.f32 1.0, %v561
      %v563 = vrcp.pop %v475
      %v564 = vmul.f32 %v475, %v563
      %v565 = vsub.f32 1.0, %v564
      %v566 = vmul.f32 %v563, %v565
      %v567 = vadd.f32 %v563, %v566
      %vm568 = vweird.f32 %v475
      %vm569 = vweird.f32 %v563
      %vm570 = vmor %vm568, %vm569
      %v571 = vsel %vm570, %v563, %v567
      %v572 = vand.u32 2147483647, %v475
      %vm573 = vcmp.eq.f32.partialorder %v572, 8.507059e+37
      %v574 = vand.u32 %v475, 2147483648
      %v575 = vor.u32 1.1754944e-38, %v574
      %v576 = vsel %vm573, %v575, %v571
      %v577 = vmul.f32 1.0, %v576
      %v578 = vrcp.pop %v476
      %v579 = vmul.f32 %v476, %v578
      %v580 = vsub.f32 1.0, %v579
      %v581 = vmul.f32 %v578, %v580
      %v582 = vadd.f32 %v578, %v581
      %vm583 = vweird.f32 %v476
      %vm584 = vweird.f32 %v578
      %vm585 = vmor %vm583, %vm584
      %v586 = vsel %vm585, %v578, %v582
      %v587 = vand.u32 2147483647, %v476
      %vm588 = vcmp.eq.f32.partialorder %v587, 8.507059e+37
      %v589 = vand.u32 %v476, 2147483648
      %v590 = vor.u32 1.1754944e-38, %v589
      %v591 = vsel %vm588, %v590, %v586
      %v592 = vmul.f32 1.0, %v591
      %v593 = vrcp.pop %v477
      %v594 = vmul.f32 %v477, %v593
      %v595 = vsub.f32 1.0, %v594
      %v596 = vmul.f32 %v593, %v595
      %v597 = vadd.f32 %v593, %v596
      %vm598 = vweird.f32 %v477
      %vm599 = vweird.f32 %v593
      %vm600 = vmor %vm598, %vm599
      %v601 = vsel %vm600, %v593, %v597
      %v602 = vand.u32 2147483647, %v477
      %vm603 = vcmp.eq.f32.partialorder %v602, 8.507059e+37
      %v604 = vand.u32 %v477, 2147483648
      %v605 = vor.u32 1.1754944e-38, %v604
      %v606 = vsel %vm603, %v605, %v601
      %v607 = vmul.f32 1.0, %v606
      %v608 = vrcp.pop %v478
      %v609 = vmul.f32 %v478, %v608
      %v610 = vsub.f32 1.0, %v609
      %v611 = vmul.f32 %v608, %v610
      %v612 = vadd.f32 %v608, %v611
      %vm613 = vweird.f32 %v478
      %vm614 = vweird.f32 %v608
      %vm615 = vmor %vm613, %vm614
      %v616 = vsel %vm615, %v608, %v612
      %v617 = vand.u32 2147483647, %v478
      %vm618 = vcmp.eq.f32.partialorder %v617, 8.507059e+37
      %v619 = vand.u32 %v478, 2147483648
      %v620 = vor.u32 1.1754944e-38, %v619
      %v621 = vsel %vm618, %v620, %v616
      %v622 = vmul.f32 1.0, %v621
      %v623 = vrcp.pop %v479
      %v624 = vmul.f32 %v479, %v623
      %v625 = vsub.f32 1.0, %v624
      %v626 = vmul.f32 %v623, %v625
      %v627 = vadd.f32 %v623, %v626
      %vm628 = vweird.f32 %v479
      %vm629 = vweird.f32 %v623
      %vm630 = vmor %vm628, %vm629
      %v631 = vsel %vm630, %v623, %v627
      %v632 = vand.u32 2147483647, %v479
      %vm633 = vcmp.eq.f32.partialorder %v632, 8.507059e+37
      %v634 = vand.u32 %v479, 2147483648
      %v635 = vor.u32 1.1754944e-38, %v634
      %v636 = vsel %vm633, %v635, %v631
      %v637 = vmul.f32 1.0, %v636
      %v638 = vrcp.pop %v480
      %v639 = vmul.f32 %v480, %v638
      %v640 = vsub.f32 1.0, %v639
      %v641 = vmul.f32 %v638, %v640
      %v642 = vadd.f32 %v638, %v641
      %vm643 = vweird.f32 %v480
      %vm644 = vweird.f32 %v638
      %vm645 = vmor %vm643, %vm644
      %v646 = vsel %vm645, %v638, %v642
      %v647 = vand.u32 2147483647, %v480
      %vm648 = vcmp.eq.f32.partialorder %v647, 8.507059e+37
      %v649 = vand.u32 %v480, 2147483648
      %v650 = vor.u32 1.1754944e-38, %v649
      %v651 = vsel %vm648, %v650, %v646
      %v652 = vmul.f32 1.0, %v651
      %v653 = vrcp.pop %v481
      %v654 = vmul.f32 %v481, %v653
      %v655 = vsub.f32 1.0, %v654
      %v656 = vmul.f32 %v653, %v655
      %v657 = vadd.f32 %v653, %v656
      %vm658 = vweird.f32 %v481
      %vm659 = vweird.f32 %v653
      %vm660 = vmor %vm658, %vm659
      %v661 = vsel %vm660, %v653, %v657
      %v662 = vand.u32 2147483647, %v481
      %vm663 = vcmp.eq.f32.partialorder %v662, 8.507059e+37
      %v664 = vand.u32 %v481, 2147483648
      %v665 = vor.u32 1.1754944e-38, %v664
      %v666 = vsel %vm663, %v665, %v661
      %v667 = vmul.f32 1.0, %v666
      %v668 = vrcp.pop %v482
      %v669 = vmul.f32 %v482, %v668
      %v670 = vsub.f32 1.0, %v669
      %v671 = vmul.f32 %v668, %v670
      %v672 = vadd.f32 %v668, %v671
      %vm673 = vweird.f32 %v482
      %vm674 = vweird.f32 %v668
      %vm675 = vmor %vm673, %vm674
      %v676 = vsel %vm675, %v668, %v672
      %v677 = vand.u32 2147483647, %v482
      %vm678 = vcmp.eq.f32.partialorder %v677, 8.507059e+37
      %v679 = vand.u32 %v482, 2147483648
      %v680 = vor.u32 1.1754944e-38, %v679
      %v681 = vsel %vm678, %v680, %v676
      %v682 = vmul.f32 1.0, %v681
      %v683 = vrcp.pop %v483
      %v684 = vmul.f32 %v483, %v683
      %v685 = vsub.f32 1.0, %v684
      %v686 = vmul.f32 %v683, %v685
      %v687 = vadd.f32 %v683, %v686
      %vm688 = vweird.f32 %v483
      %vm689 = vweird.f32 %v683
      %vm690 = vmor %vm688, %vm689
      %v691 = vsel %vm690, %v683, %v687
      %v692 = vand.u32 2147483647, %v483
      %vm693 = vcmp.eq.f32.partialorder %v692, 8.507059e+37
      %v694 = vand.u32 %v483, 2147483648
      %v695 = vor.u32 1.1754944e-38, %v694
      %v696 = vsel %vm693, %v695, %v691
      %v697 = vmul.f32 1.0, %v696
      %v698 = vrcp.pop %v484
      %v699 = vmul.f32 %v484, %v698
      %v700 = vsub.f32 1.0, %v699
      %v701 = vmul.f32 %v698, %v700
      %v702 = vadd.f32 %v698, %v701
      %vm703 = vweird.f32 %v484
      %vm704 = vweird.f32 %v698
      %vm705 = vmor %vm703, %vm704
      %v706 = vsel %vm705, %v698, %v702
      %v707 = vand.u32 2147483647, %v484
      %vm708 = vcmp.eq.f32.partialorder %v707, 8.507059e+37
      %v709 = vand.u32 %v484, 2147483648
      %v710 = vor.u32 1.1754944e-38, %v709
      %v711 = vsel %vm708, %v710, %v706
      %v712 = vmul.f32 1.0, %v711
      %v713 = vrcp.pop %v485
      %v714 = vmul.f32 %v485, %v713
      %v715 = vsub.f32 1.0, %v714
      %v716 = vmul.f32 %v713, %v715
      %v717 = vadd.f32 %v713, %v716
      %vm718 = vweird.f32 %v485
      %vm719 = vweird.f32 %v713
      %vm720 = vmor %vm718, %vm719
      %v721 = vsel %vm720, %v713, %v717
      %v722 = vand.u32 2147483647, %v485
      %vm723 = vcmp.eq.f32.partialorder %v722, 8.507059e+37
      %v724 = vand.u32 %v485, 2147483648
      %v725 = vor.u32 1.1754944e-38, %v724
      %v726 = vsel %vm723, %v725, %v721
      %v727 = vmul.f32 1.0, %v726
      %v728 = vrcp.pop %v486
      %v729 = vmul.f32 %v486, %v728
      %v730 = vsub.f32 1.0, %v729
      %v731 = vmul.f32 %v728, %v730
      %v732 = vadd.f32 %v728, %v731
      %vm733 = vweird.f32 %v486
      %vm734 = vweird.f32 %v728
      %vm735 = vmor %vm733, %vm734
      %v736 = vsel %vm735, %v728, %v732
      %v737 = vand.u32 2147483647, %v486
      %vm738 = vcmp.eq.f32.partialorder %v737, 8.507059e+37
      %v739 = vand.u32 %v486, 2147483648
      %v740 = vor.u32 1.1754944e-38, %v739
      %v741 = vsel %vm738, %v740, %v736
      %v742 = vmul.f32 1.0, %v741
      %v743 = vrcp.pop %v487
      %v744 = vmul.f32 %v487, %v743
      %v745 = vsub.f32 1.0, %v744
      %v746 = vmul.f32 %v743, %v745
      %v747 = vadd.f32 %v743, %v746
      %vm748 = vweird.f32 %v487
      %vm749 = vweird.f32 %v743
      %vm750 = vmor %vm748, %vm749
      %v751 = vsel %vm750, %v743, %v747
      %v752 = vand.u32 2147483647, %v487
      %vm753 = vcmp.eq.f32.partialorder %v752, 8.507059e+37
      %v754 = vand.u32 %v487, 2147483648
      %v755 = vor.u32 1.1754944e-38, %v754
      %v756 = vsel %vm753, %v755, %v751
      %v757 = vmul.f32 1.0, %v756
      %v758 = vrcp.pop %v488
      %v759 = vmul.f32 %v488, %v758
      %v760 = vsub.f32 1.0, %v759
      %v761 = vmul.f32 %v758, %v760
      %v762 = vadd.f32 %v758, %v761
      %vm763 = vweird.f32 %v488
      %vm764 = vweird.f32 %v758
      %vm765 = vmor %vm763, %vm764
      %v766 = vsel %vm765, %v758, %v762
      %v767 = vand.u32 2147483647, %v488
      %vm768 = vcmp.eq.f32.partialorder %v767, 8.507059e+37
      %v769 = vand.u32 %v488, 2147483648
      %v770 = vor.u32 1.1754944e-38, %v769
      %v771 = vsel %vm768, %v770, %v766
      %v772 = vmul.f32 1.0, %v771
      %v773 = vrcp.pop %v489
      %v774 = vmul.f32 %v489, %v773
      %v775 = vsub.f32 1.0, %v774
      %v776 = vmul.f32 %v773, %v775
      %v777 = vadd.f32 %v773, %v776
      %vm778 = vweird.f32 %v489
      %vm779 = vweird.f32 %v773
      %vm780 = vmor %vm778, %vm779
      %v781 = vsel %vm780, %v773, %v777
      %v782 = vand.u32 2147483647, %v489
      %vm783 = vcmp.eq.f32.partialorder %v782, 8.507059e+37
      %v784 = vand.u32 %v489, 2147483648
      %v785 = vor.u32 1.1754944e-38, %v784
      %v786 = vsel %vm783, %v785, %v781
      %v787 = vmul.f32 1.0, %v786
      %v788 = vrcp.pop %v490
      %v789 = vmul.f32 %v490, %v788
      %v790 = vsub.f32 1.0, %v789
      %v791 = vmul.f32 %v788, %v790
      %v792 = vadd.f32 %v788, %v791
      %vm793 = vweird.f32 %v490
      %vm794 = vweird.f32 %v788
      %vm795 = vmor %vm793, %vm794
      %v796 = vsel %vm795, %v788, %v792
      %v797 = vand.u32 2147483647, %v490
      %vm798 = vcmp.eq.f32.partialorder %v797, 8.507059e+37
      %v799 = vand.u32 %v490, 2147483648
      %v800 = vor.u32 1.1754944e-38, %v799
      %v801 = vsel %vm798, %v800, %v796
      %v802 = vmul.f32 1.0, %v801
      %v803 = vrcp.pop %v491
      %v804 = vmul.f32 %v491, %v803
      %v805 = vsub.f32 1.0, %v804
      %v806 = vmul.f32 %v803, %v805
      %v807 = vadd.f32 %v803, %v806
      %vm808 = vweird.f32 %v491
      %vm809 = vweird.f32 %v803
      %vm810 = vmor %vm808, %vm809
      %v811 = vsel %vm810, %v803, %v807
      %v812 = vand.u32 2147483647, %v491
      %vm813 = vcmp.eq.f32.partialorder %v812, 8.507059e+37
      %v814 = vand.u32 %v491, 2147483648
      %v815 = vor.u32 1.1754944e-38, %v814
      %v816 = vsel %vm813, %v815, %v811
      %v817 = vmul.f32 1.0, %v816
      %v818 = vrcp.pop %v492
      %v819 = vmul.f32 %v492, %v818
      %v820 = vsub.f32 1.0, %v819
      %v821 = vmul.f32 %v818, %v820
      %v822 = vadd.f32 %v818, %v821
      %vm823 = vweird.f32 %v492
      %vm824 = vweird.f32 %v818
      %vm825 = vmor %vm823, %vm824
      %v826 = vsel %vm825, %v818, %v822
      %v827 = vand.u32 2147483647, %v492
      %vm828 = vcmp.eq.f32.partialorder %v827, 8.507059e+37
      %v829 = vand.u32 %v492, 2147483648
      %v830 = vor.u32 1.1754944e-38, %v829
      %v831 = vsel %vm828, %v830, %v826
      %v832 = vmul.f32 1.0, %v831
      %v833 = vrcp.pop %v493
      %v834 = vmul.f32 %v493, %v833
      %v835 = vsub.f32 1.0, %v834
      %v836 = vmul.f32 %v833, %v835
      %v837 = vadd.f32 %v833, %v836
      %vm838 = vweird.f32 %v493
      %vm839 = vweird.f32 %v833
      %vm840 = vmor %vm838, %vm839
      %v841 = vsel %vm840, %v833, %v837
      %v842 = vand.u32 2147483647, %v493
      %vm843 = vcmp.eq.f32.partialorder %v842, 8.507059e+37
      %v844 = vand.u32 %v493, 2147483648
      %v845 = vor.u32 1.1754944e-38, %v844
      %v846 = vsel %vm843, %v845, %v841
      %v847 = vmul.f32 1.0, %v846
      %v848 = vrcp.pop %v494
      %v849 = vmul.f32 %v494, %v848
      %v850 = vsub.f32 1.0, %v849
      %v851 = vmul.f32 %v848, %v850
      %v852 = vadd.f32 %v848, %v851
      %vm853 = vweird.f32 %v494
      %vm854 = vweird.f32 %v848
      %vm855 = vmor %vm853, %vm854
      %v856 = vsel %vm855, %v848, %v852
      %v857 = vand.u32 2147483647, %v494
      %vm858 = vcmp.eq.f32.partialorder %v857, 8.507059e+37
      %v859 = vand.u32 %v494, 2147483648
      %v860 = vor.u32 1.1754944e-38, %v859
      %v861 = vsel %vm858, %v860, %v856
      %v862 = vmul.f32 1.0, %v861
      %v863 = vrcp.pop %v495
      %v864 = vmul.f32 %v495, %v863
      %v865 = vsub.f32 1.0, %v864
      %v866 = vmul.f32 %v863, %v865
      %v867 = vadd.f32 %v863, %v866
      %vm868 = vweird.f32 %v495
      %vm869 = vweird.f32 %v863
      %vm870 = vmor %vm868, %vm869
      %v871 = vsel %vm870, %v863, %v867
      %v872 = vand.u32 2147483647, %v495
      %vm873 = vcmp.eq.f32.partialorder %v872, 8.507059e+37
      %v874 = vand.u32 %v495, 2147483648
      %v875 = vor.u32 1.1754944e-38, %v874
      %v876 = vsel %vm873, %v875, %v871
      %v877 = vmul.f32 1.0, %v876
      %v878 = vrcp.pop %v496
      %v879 = vmul.f32 %v496, %v878
      %v880 = vsub.f32 1.0, %v879
      %v881 = vmul.f32 %v878, %v880
      %v882 = vadd.f32 %v878, %v881
      %vm883 = vweird.f32 %v496
      %vm884 = vweird.f32 %v878
      %vm885 = vmor %vm883, %vm884
      %v886 = vsel %vm885, %v878, %v882
      %v887 = vand.u32 2147483647, %v496
      %vm888 = vcmp.eq.f32.partialorder %v887, 8.507059e+37
      %v889 = vand.u32 %v496, 2147483648
      %v890 = vor.u32 1.1754944e-38, %v889
      %v891 = vsel %vm888, %v890, %v886
      %v892 = vmul.f32 1.0, %v891
      %v893 = vrcp.pop %v497
      %v894 = vmul.f32 %v497, %v893
      %v895 = vsub.f32 1.0, %v894
      %v896 = vmul.f32 %v893, %v895
      %v897 = vadd.f32 %v893, %v896
      %vm898 = vweird.f32 %v497
      %vm899 = vweird.f32 %v893
      %vm900 = vmor %vm898, %vm899
      %v901 = vsel %vm900, %v893, %v897
      %v902 = vand.u32 2147483647, %v497
      %vm903 = vcmp.eq.f32.partialorder %v902, 8.507059e+37
      %v904 = vand.u32 %v497, 2147483648
      %v905 = vor.u32 1.1754944e-38, %v904
      %v906 = vsel %vm903, %v905, %v901
      %v907 = vmul.f32 1.0, %v906
      %v908 = vrcp.pop %v498
      %v909 = vmul.f32 %v498, %v908
      %v910 = vsub.f32 1.0, %v909
      %v911 = vmul.f32 %v908, %v910
      %v912 = vadd.f32 %v908, %v911
      %vm913 = vweird.f32 %v498
      %vm914 = vweird.f32 %v908
      %vm915 = vmor %vm913, %vm914
      %v916 = vsel %vm915, %v908, %v912
      %v917 = vand.u32 2147483647, %v498
      %vm918 = vcmp.eq.f32.partialorder %v917, 8.507059e+37
      %v919 = vand.u32 %v498, 2147483648
      %v920 = vor.u32 1.1754944e-38, %v919
      %v921 = vsel %vm918, %v920, %v916
      %v922 = vmul.f32 1.0, %v921
      %v923 = vrcp.pop %v499
      %v924 = vmul.f32 %v499, %v923
      %v925 = vsub.f32 1.0, %v924
      %v926 = vmul.f32 %v923, %v925
      %v927 = vadd.f32 %v923, %v926
      %vm928 = vweird.f32 %v499
      %vm929 = vweird.f32 %v923
      %vm930 = vmor %vm928, %vm929
      %v931 = vsel %vm930, %v923, %v927
      %v932 = vand.u32 2147483647, %v499
      %vm933 = vcmp.eq.f32.partialorder %v932, 8.507059e+37
      %v934 = vand.u32 %v499, 2147483648
      %v935 = vor.u32 1.1754944e-38, %v934
      %v936 = vsel %vm933, %v935, %v931
      %v937 = vmul.f32 1.0, %v936
      %v938 = vrcp.pop %v500
      %v939 = vmul.f32 %v500, %v938
      %v940 = vsub.f32 1.0, %v939
      %v941 = vmul.f32 %v938, %v940
      %v942 = vadd.f32 %v938, %v941
      %vm943 = vweird.f32 %v500
      %vm944 = vweird.f32 %v938
      %vm945 = vmor %vm943, %vm944
      %v946 = vsel %vm945, %v938, %v942
      %v947 = vand.u32 2147483647, %v500
      %vm948 = vcmp.eq.f32.partialorder %v947, 8.507059e+37
      %v949 = vand.u32 %v500, 2147483648
      %v950 = vor.u32 1.1754944e-38, %v949
      %v951 = vsel %vm948, %v950, %v946
      %v952 = vmul.f32 1.0, %v951
      %v953 = vrcp.pop %v501
      %v954 = vmul.f32 %v501, %v953
      %v955 = vsub.f32 1.0, %v954
      %v956 = vmul.f32 %v953, %v955
      %v957 = vadd.f32 %v953, %v956
      %vm958 = vweird.f32 %v501
      %vm959 = vweird.f32 %v953
      %vm960 = vmor %vm958, %vm959
      %v961 = vsel %vm960, %v953, %v957
      %v962 = vand.u32 2147483647, %v501
      %vm963 = vcmp.eq.f32.partialorder %v962, 8.507059e+37
      %v964 = vand.u32 %v501, 2147483648
      %v965 = vor.u32 1.1754944e-38, %v964
      %v966 = vsel %vm963, %v965, %v961
      %v967 = vmul.f32 1.0, %v966
      %v968 = vrcp.pop %v502
      %v969 = vmul.f32 %v502, %v968
      %v970 = vsub.f32 1.0, %v969
      %v971 = vmul.f32 %v968, %v970
      %v972 = vadd.f32 %v968, %v971
      %vm973 = vweird.f32 %v502
      %vm974 = vweird.f32 %v968
      %vm975 = vmor %vm973, %vm974
      %v976 = vsel %vm975, %v968, %v972
      %v977 = vand.u32 2147483647, %v502
      %vm978 = vcmp.eq.f32.partialorder %v977, 8.507059e+37
      %v979 = vand.u32 %v502, 2147483648
      %v980 = vor.u32 1.1754944e-38, %v979
      %v981 = vsel %vm978, %v980, %v976
      %v982 = vmul.f32 1.0, %v981
      %v983 = vmul.f32 %v296, %v517
      %v984 = vmul.f32 %v298, %v532
      %v985 = vmul.f32 %v301, %v547
      %v986 = vmul.f32 %v303, %v562
      %v987 = vmul.f32 %v306, %v577
      %v988 = vmul.f32 %v308, %v592
      %v989 = vmul.f32 %v311, %v607
      %v990 = vmul.f32 %v313, %v622
      %v991 = vmul.f32 %v316, %v637
      %v992 = vmul.f32 %v318, %v652
      %v993 = vmul.f32 %v321, %v667
      %v994 = vmul.f32 %v323, %v682
      %v995 = vmul.f32 %v326, %v697
      %v996 = vmul.f32 %v328, %v712
      %v997 = vmul.f32 %v331, %v727
      %v998 = vmul.f32 %v333, %v742
      %v999 = vmul.f32 %v336, %v757
      %v1000 = vmul.f32 %v338, %v772
      %v1001 = vmul.f32 %v341, %v787
      %v1002 = vmul.f32 %v343, %v802
      %v1003 = vmul.f32 %v346, %v817
      %v1004 = vmul.f32 %v348, %v832
      %v1005 = vmul.f32 %v351, %v847
      %v1006 = vmul.f32 %v353, %v862
      %v1007 = vmul.f32 %v356, %v877
      %v1008 = vmul.f32 %v358, %v892
      %v1009 = vmul.f32 %v361, %v907
      %v1010 = vmul.f32 %v363, %v922
      %v1011 = vmul.f32 %v366, %v937
      %v1012 = vmul.f32 %v368, %v952
      %v1013 = vmul.f32 %v371, %v967
      %v1014 = vmul.f32 %v373, %v982
      %1015 = vst.msk [vmem:[%s172] sm:$0xff] %vm234, %v983
      %1016 = vst.msk [vmem:[%s172 + $0x8] sm:$0xff] %vm234, %v984
      %1017 = vst.msk [vmem:[%s172 + $0x10] sm:$0xff] %vm234, %v985
      %1018 = vst.msk [vmem:[%s172 + $0x18] sm:$0xff] %vm234, %v986
      %1019 = vst.msk [vmem:[%s172 + $0x20] sm:$0xff] %vm234, %v987
      %1020 = vst.msk [vmem:[%s172 + $0x28] sm:$0xff] %vm234, %v988
      %1021 = vst.msk [vmem:[%s172 + $0x30] sm:$0xff] %vm234, %v989
      %1022 = vst.msk [vmem:[%s172 + $0x38] sm:$0xff] %vm234, %v990
      %1023 = vst.msk [vmem:[%s172 + $0x40] sm:$0xff] %vm234, %v991
      %1024 = vst.msk [vmem:[%s172 + $0x48] sm:$0xff] %vm234, %v992
      %1025 = vst.msk [vmem:[%s172 + $0x50] sm:$0xff] %vm234, %v993
      %1026 = vst.msk [vmem:[%s172 + $0x58] sm:$0xff] %vm234, %v994
      %1027 = vst.msk [vmem:[%s172 + $0x60] sm:$0xff] %vm234, %v995
      %1028 = vst.msk [vmem:[%s172 + $0x68] sm:$0xff] %vm234, %v996
      %1029 = vst.msk [vmem:[%s172 + $0x70] sm:$0xff] %vm234, %v997
      %1030 = vst.msk [vmem:[%s172 + $0x78] sm:$0xff] %vm234, %v998
      %1031 = vst.msk [vmem:[%s172 + $0x80] sm:$0xff] %vm234, %v999
      %1032 = vst.msk [vmem:[%s172 + $0x88] sm:$0xff] %vm234, %v1000
      %1033 = vst.msk [vmem:[%s172 + $0x90] sm:$0xff] %vm234, %v1001
      %1034 = vst.msk [vmem:[%s172 + $0x98] sm:$0xff] %vm234, %v1002
      %1035 = vst.msk [vmem:[%s172 + $0xa0] sm:$0xff] %vm234, %v1003
      %1036 = vst.msk [vmem:[%s172 + $0xa8] sm:$0xff] %vm234, %v1004
      %1037 = vst.msk [vmem:[%s172 + $0xb0] sm:$0xff] %vm234, %v1005
      %1038 = vst.msk [vmem:[%s172 + $0xb8] sm:$0xff] %vm234, %v1006
      %1039 = vst.msk [vmem:[%s172 + $0xc0] sm:$0xff] %vm234, %v1007
      %1040 = vst.msk [vmem:[%s172 + $0xc8] sm:$0xff] %vm234, %v1008
      %1041 = vst.msk [vmem:[%s172 + $0xd0] sm:$0xff] %vm234, %v1009
      %1042 = vst.msk [vmem:[%s172 + $0xd8] sm:$0xff] %vm234, %v1010
      %1043 = vst.msk [vmem:[%s172 + $0xe0] sm:$0xff] %vm234, %v1011
      %1044 = vst.msk [vmem:[%s172 + $0xe8] sm:$0xff] %vm234, %v1012
      %1045 = vst.msk [vmem:[%s172 + $0xf0] sm:$0xff] %vm234, %v1013
      %1046 = vst.msk [vmem:[%s172 + $0xf8] sm:$0xff] %vm234, %v1014
      %s1047 = smul.u32 32, %s14
      %p1048 = scmp.lt.s32.totalorder %s1047, 63
      %s1049 = scalar_select %p1048, %s1047, 63
      %s1050 = smul.addr %s1049, 8
      %s1051 = scalar_lea.vmem %s3, %s1050
      // Predicated region
      $region33: #{tpu_custom_call.1} parent=31 // pred_check
        %p1052 = pneg %p100
      $region34: #{tpu_custom_call.1} parent=31 // pred_check_branch
        %1054 = sbr.rel (%p1052) target = $region36
      $region35: #{tpu_custom_call.1} parent=31 // pred_region
        %s1055 = smul.u32 32, %s14
      $region36: #{tpu_custom_call.1} parent=31 // pred_fallthru
        _
    $region32: #{tpu_custom_call.1} parent=5 // pred_fallthru
      _
    %p1056 = scmp.le.s32.totalorder 2, %s9
    // Predicated region
    $region37: #{tpu_custom_call.1} parent=5 // pred_check
      %p1057 = pneg %p1056
    $region38: #{tpu_custom_call.1} parent=5 // pred_check_branch
      %1059 = sbr.rel (%p1057) target = $region40
    $region39: #{tpu_custom_call.1} parent=5 // pred_region
      %s1060 = ssub.s32 %s9, 2
      // Predicated region
      $region41: #{tpu_custom_call.1} parent=39 // pred_check
        %p1061 = pneg %p106
      $region42: #{tpu_custom_call.1} parent=39 // pred_check_branch
        %1063 = sbr.rel (%p1061) target = $region44
      $region43: #{tpu_custom_call.1} parent=39 // pred_region
        %s1064 = smul.u32 32, %s15
        %p1065 = scmp.lt.s32.totalorder %s1064, 63
        %s1066 = scalar_select %p1065, %s1064, 63
        %s1067 = smul.addr %s1066, 8
        %s1068 = scalar_lea.vmem %s3, %s1067
      $region44: #{tpu_custom_call.1} parent=39 // pred_fallthru
        _
    $region40: #{tpu_custom_call.1} parent=5 // pred_fallthru
      _
  $region6: #{tpu_custom_call.1} parent=0 // loop_footer
    %s13 = sadd.s32 1, %s9
  $region7: #{tpu_custom_call.1} parent=0 // loop_footer_branch
    %8 = sbr.rel target = $region3
  $region8: #{tpu_custom_call.1} parent=0 // loop_exit
    _

</llo_original>
